<compile_context>
chip_gen: v6e
topology: v6e:2x2x1
jax: 0.10.0
libtpu: 0.0.40
codegen_flags: <defaults>
</compile_context>

<pallas_src>
import functools

import jax
import jax.numpy as jnp
from jax import lax
from jax.experimental import pallas as pl
from jax.experimental.pallas import tpu as pltpu


_NEG_FILL = -9e15          # value used by masked_fill_ in the reference
_LOG_EPS = 1e-8
_DENOM_EPS = 1e-8
_NORM_EPS_SQ = 1e-24       # (F.normalize default eps = 1e-12) ** 2


def _round_up(x: int, m: int) -> int:
    return ((x + m - 1) // m) * m


def _vmem_capacity_bytes() -> int:
    """Per-core VMEM capacity; conservative default if the query fails."""
    try:
        return int(pltpu.get_tpu_info().vmem_capacity_bytes)
    except Exception:
        return 64 * 1024 * 1024            # v7x per-TensorCore value (safe floor)


def _choose_tiling(B: int, D: int, vmem_cap: int):
    """Pick the anchor-row tile TM and the padded batch Bp (generation aware)."""
    big_vmem = vmem_cap >= (96 << 20)      # v5e / v6e (128 MiB) vs v7x (64 MiB)
    budget = int(0.70 * vmem_cap)
    cands = (512, 256, 128) if big_vmem else (256, 128)
    for tm in cands:
        if B < 2 * tm:                     # keep >= 2 blocks so both v7x TCs get work
            continue
        Bp = _round_up(B, tm)
        need = (Bp * D * 2                 # resident bf16 keys (single buffer)
                + 6 * tm * Bp * 4          # sim tile + f32 element-wise temporaries
                + 4 * tm * D * 4           # query slice / scaled copy
                + (2 << 20))               # labels / counts / output blocks + slack
        if need <= budget:
            return tm, Bp
    if B >= 2 * cands[-1]:
        # Large batch whose keys+sim do not fit comfortably: keep the smallest
        # MXU-friendly tile rather than one giant block.
        # TODO(synk): add a 2-D (anchor-parallel x key-arbitrary) grid with
        # (TM,1) VMEM accumulators for huge B*D on v7x's 64 MiB/TC instead of
        # relying on fully-resident keys.
        tm = cands[-1]
        return tm, _round_up(B, tm)
    # Small batch: a single padded block (sublane-aligned).
    Bp = _round_up(max(B, 8), 8)
    return Bp, Bp


def _normalize_kernel(x_ref, xn_ref):
    """Row-wise L2 normalize (F.normalize(x, dim=1), eps=1e-12) -> bf16."""
    x = x_ref[...].astype(jnp.float32)                        # (TM, D)
    sumsq = jnp.sum(x * x, axis=1, keepdims=True)             # (TM, 1)
    # x / max(||x||, 1e-12) == x * rsqrt(max(||x||^2, 1e-24))
    inv_norm = lax.rsqrt(jnp.maximum(sumsq, jnp.float32(_NORM_EPS_SQ)))
    xn_ref[...] = (x * inv_norm).astype(xn_ref.dtype)


def _supcon_rows_kernel(k_ref, labc_ref, labr_ref, cnt_ref, out_ref, *,
                        inv_temp, block_m, n_real):
    i = pl.program_id(0)
    start = pl.multiple_of(i * block_m, block_m)

    k = k_ref[...]                                            # (Bp, D) bf16, resident
    # Anchor rows are already resident as part of the keys: slice, no extra DMA.
    q = k_ref[pl.ds(start, block_m), :]                       # (TM, D) bf16
    # Pre-scale queries by 1/T (f32 multiply, re-round to bf16): moves the
    # temperature scaling off the (TM, Bp) sim tile onto the (TM, D) tile.
    q = (q * jnp.float32(inv_temp)).astype(jnp.bfloat16)

    # (TM, D) . (Bp, D)^T on the MXU, contracting last dims (no transpose
    # materialized), f32 accumulation.
    sim = lax.dot_general(q, k, (((1,), (1,)), ((), ())),
                          preferred_element_type=jnp.float32)  # (TM, Bp)

    tm, bp = sim.shape
    cols = lax.broadcasted_iota(jnp.int32, (tm, bp), 1)
    rows = lax.broadcasted_iota(jnp.int32, (tm, bp), 0) + start

    # masked_fill_ of the (global) diagonal with -9e15.  The -9e15 stays inside
    # the positive numerator (matches the PyTorch reference verbatim); its exp
    # underflows to 0, so it drops out of sum_exp with no extra masking.
    sim = jnp.where(rows == cols, jnp.float32(_NEG_FILL), sim)

    # Padded key columns (zero vectors -> sim == 0 -> exp == 1) must not
    # contribute to sum_exp nor to the positive mask.
    valid = cols < n_real

    sum_exp = jnp.sum(jnp.where(valid, jnp.exp(sim), 0.0),
                      axis=1, keepdims=True)                  # (TM, 1)
    log_z = jnp.log(sum_exp + jnp.float32(_LOG_EPS))          # (TM, 1)

    # Boolean label mask via broadcast compare (no float mask materialized).
    mask = (labc_ref[...] == labr_ref[...]) & valid           # (TM,1)==(1,Bp) -> (TM,Bp)
    masked_sim = jnp.sum(jnp.where(mask, sim, 0.0),
                         axis=1, keepdims=True)               # (TM, 1)

    cnt = cnt_ref[...]                                        # (TM, 1) f32, precomputed
    # sum(mask * log_prob) = sum(mask * sim) - count(mask) * log_z
    numer = masked_sim - cnt * log_z
    out_ref[...] = numer / (cnt - jnp.float32(1.0) + jnp.float32(_DENOM_EPS))


def supcon_loss(features: jax.Array, labels: jax.Array,
                temperature: float = 0.07) -> jax.Array:
    """Pallas implementation of SupConLoss.forward(features, labels)."""
    B, D = features.shape
    vmem_cap = _vmem_capacity_bytes()
    tm, Bp = _choose_tiling(B, D, vmem_cap)
    n_blocks = Bp // tm

    labels_i = labels.reshape(-1).astype(jnp.int32)
    # Per-anchor positive counts (label_mask.sum(1) in the reference).  Label
    # only O(B^2) compare+reduce in the wrapper (XLA fuses it), so the kernel
    # drops one (TM, B) select + cross-lane reduce per grid step.
    cnt = jnp.sum((labels_i[:, None] == labels_i[None, :]).astype(jnp.float32),
                  axis=1)

    if Bp != B:
        feats_p = jnp.pad(features, ((0, Bp - B), (0, 0)))
        labels_p = jnp.concatenate(
            [labels_i, jnp.full((Bp - B,), -1, jnp.int32)])
        cnt_p = jnp.concatenate(
            [cnt, jnp.full((Bp - B,), 2.0, jnp.float32)])
    else:
        feats_p, labels_p, cnt_p = features, labels_i, cnt

    labels_col = labels_p.reshape(Bp, 1)     # sublane-oriented anchor labels
    labels_row = labels_p.reshape(1, Bp)     # lane-dense key labels
    cnt_col = cnt_p.reshape(Bp, 1)

    # Generation-aware VMEM budget (~96 MiB on v5e/v6e, ~48 MiB on v7x).
    vmem_limit = int(min(128 << 20, max(32 << 20, int(0.75 * vmem_cap))))

    # ---- pass 1: row-wise L2 normalize -> bf16 keys for the MXU -------------
    xn = pl.pallas_call(
        _normalize_kernel,
        out_shape=jax.ShapeDtypeStruct((Bp, D), jnp.bfloat16),
        grid=(n_blocks,),
        in_specs=[pl.BlockSpec((tm, D), lambda i: (i, 0))],
        out_specs=pl.BlockSpec((tm, D), lambda i: (i, 0)),
        compiler_params=pltpu.CompilerParams(
            dimension_semantics=("parallel",),
            vmem_limit_bytes=vmem_limit),
    )(feats_p)

    # ---- pass 2: per-anchor mean log-prob over anchor row blocks ------------
    kernel = functools.partial(
        _supcon_rows_kernel,
        inv_temp=1.0 / float(temperature), block_m=tm, n_real=B)

    cost = pl.CostEstimate(
        flops=2 * Bp * Bp * D + 8 * Bp * Bp,
        transcendentals=Bp * Bp + 2 * Bp,
        bytes_accessed=Bp * D * 2 + 3 * Bp * 4 + Bp * 4)

    def run_pass2(key_pipeline_mode):
        if key_pipeline_mode is None:
            key_spec = pl.BlockSpec((Bp, D), lambda i: (0, 0))
        else:
            key_spec = pl.BlockSpec((Bp, D), lambda i: (0, 0),
                                    pipeline_mode=key_pipeline_mode)
        return pl.pallas_call(
            kernel,
            out_shape=jax.ShapeDtypeStruct((Bp, 1), jnp.float32),
            grid=(n_blocks,),
            in_specs=[
                key_spec,                                    # resident bf16 keys
                pl.BlockSpec((tm, 1), lambda i: (i, 0)),     # anchor labels
                pl.BlockSpec((1, Bp), lambda i: (0, 0)),     # key labels (lane-dense)
                pl.BlockSpec((tm, 1), lambda i: (i, 0)),     # positive counts
            ],
            out_specs=pl.BlockSpec((tm, 1), lambda i: (i, 0)),
            compiler_params=pltpu.CompilerParams(
                dimension_semantics=("parallel",),
                vmem_limit_bytes=vmem_limit),
            cost_estimate=cost,
        )(xn, labels_col, labels_row, cnt_col)

    try:
        # Constant-index resident operand: request a single pipeline buffer so
        # the keys are held once in VMEM instead of being double-buffered.
        mean_log_prob = run_pass2(pl.Buffered(1))
    except Exception:
        # TODO(synk): this jax version rejected single-buffering of the
        # constant-index operand; fall back to the default 2-deep pipeline.
        mean_log_prob = run_pass2(None)

    # loss = -mean over the *real* anchors (padded rows are dropped).
    return -jnp.mean(mean_log_prob[:B, 0])


def _supcon_reference(features, labels, temperature):
    """Pure-JAX transcription of the PyTorch module (f32), for validation."""
    f = features.astype(jnp.float32)
    n = jnp.sqrt(jnp.sum(f * f, axis=1, keepdims=True))
    f = f / jnp.maximum(n, 1e-12)
    bsz = f.shape[0]
    sim = (f @ f.T) / temperature
    sim = jnp.where(jnp.eye(bsz, dtype=bool), _NEG_FILL, sim)
    lab = labels.reshape(-1, 1)
    label_mask = (lab == lab.T).astype(jnp.float32)
    log_prob = sim - jnp.log(jnp.exp(sim).sum(1, keepdims=True) + 1e-8)
    denom = label_mask.sum(1) - 1.0
    mean_log_prob = (label_mask * log_prob).sum(1) / (denom + 1e-8)
    return -jnp.mean(mean_log_prob)


if __name__ == "__main__":
    key = jax.random.PRNGKey(0)
    kf, kl = jax.random.split(key)

    # Batch of 8 embeddings, feature dim 32.
    B, D = 8, 32
    features = jax.random.normal(kf, (B, D), dtype=jnp.float32)
    labels = jax.random.randint(kl, (B,), 0, 3, dtype=jnp.int32)

    loss = supcon_loss(features, labels, temperature=0.07)
    jax.block_until_ready(loss)

    ref = _supcon_reference(features, labels, 0.07)
    rel = abs(float(loss) - float(ref)) / max(abs(float(ref)), 1e-30)
    assert rel < 1e-2, (float(loss), float(ref))

    # Exercise the non-divisible-batch (padding) path as well.
    B2 = 12
    kf2, kl2 = jax.random.split(kl)
    features2 = jax.random.normal(kf2, (B2, D), dtype=jnp.float32)
    labels2 = jax.random.randint(kl2, (B2,), 0, 4, dtype=jnp.int32)
    loss2 = supcon_loss(features2, labels2, temperature=0.07)
    jax.block_until_ready(loss2)
    ref2 = _supcon_reference(features2, labels2, 0.07)
    rel2 = abs(float(loss2) - float(ref2)) / max(abs(float(ref2)), 1e-30)
    assert rel2 < 1e-2, (float(loss2), float(ref2))

    print("KERNEL_OK")
</pallas_src>

<mosaic_0001>
module attributes {stable_mosaic.version = 11 : i64} {
  func.func @_normalize_kernel(%arg0: i32, %arg1: memref<8x32xf32, #tpu.memory_space<vmem>>, %arg2: memref<8x32xbf16, #tpu.memory_space<vmem>>) attributes {dimension_semantics = [#tpu.dimension_semantics<parallel>], iteration_bounds = array<i64: 1>, scalar_prefetch = 0 : i64, scratch_operands = 0 : i64, tpu.core_type = #tpu.core_type<tc>, window_params = [{transform_indices = @transform_0, window_bounds = array<i64: 8, 32>}, {transform_indices = @transform_1, window_bounds = array<i64: 8, 32>}]} {
    %c0 = arith.constant 0 : index
    %c0_0 = arith.constant 0 : index
    %0 = vector.load %arg1[%c0, %c0_0] : memref<8x32xf32, #tpu.memory_space<vmem>>, vector<8x32xf32>
    %1 = arith.mulf %0, %0 : vector<8x32xf32>
    %cst = arith.constant dense<0.000000e+00> : vector<8xf32>
    %2 = vector.multi_reduction <add>, %1, %cst [1] : vector<8x32xf32> to vector<8xf32>
    %3 = vector.shape_cast %2 : vector<8xf32> to vector<8x1xf32>
    %cst_1 = arith.constant 1.000000e-24 : f32
    %4 = vector.broadcast %cst_1 : f32 to vector<8x1xf32>
    %5 = arith.maximumf %3, %4 : vector<8x1xf32>
    %6 = math.rsqrt %5 : vector<8x1xf32>
    %7 = vector.broadcast %6 : vector<8x1xf32> to vector<8x32xf32>
    %8 = arith.mulf %0, %7 : vector<8x32xf32>
    %9 = arith.truncf %8 : vector<8x32xf32> to vector<8x32xbf16>
    %c0_2 = arith.constant 0 : index
    %c0_3 = arith.constant 0 : index
    %10 = vector.load %arg2[%c0_2, %c0_3] : memref<8x32xbf16, #tpu.memory_space<vmem>>, vector<8x32xbf16>
    tpu.vector_store %arg2[%c0_2, %c0_3], %9 {strides = array<i32>} : memref<8x32xbf16, #tpu.memory_space<vmem>>, vector<8x32xbf16>,
    return
  }
  func.func @transform_0(%arg0: i32) -> (i32, i32) {
    %c0_i32 = arith.constant 0 : i32
    %c0_i32_0 = arith.constant 0 : i32
    return %arg0, %c0_i32 : i32, i32
  }
  func.func @transform_1(%arg0: i32) -> (i32, i32) {
    %c0_i32 = arith.constant 0 : i32
    %c0_i32_0 = arith.constant 0 : i32
    return %arg0, %c0_i32 : i32, i32
  }
}

</mosaic_0001>

<llo_original>
// kernel: tpu_custom_call.1
$region0: #{tpu_custom_call.1}
  #allocation0 [shape = 'u32[]', space=smem, size = 0x4, offset = 0x4, fixed_abs, tag = 'smem constant byte address 0x4 - core index']
  #allocation1 [shape = 'u32[144,128]{1,0:T(1,128)}', space=vmem, size = 0x12000, scoped, tag = 'internal scratch']
  %s0 = inlined_call_operand.hbm [shape: f32[8,32], index: 0, kind: input, shape index: {}]
  %s1 = inlined_call_operand.hbm [shape: bf16[8,32], index: 1, kind: output, shape index: {}]
  %s2 = sld [smem:[#allocation0]]
  $region18: #{tpu_custom_call.1} parent=0
    _
  %s4 = ssub.s32 1, %s2
  %s5 = scalar_select 0, %s4, %s2
  $region1: #{tpu_custom_call.1} parent=0
    #allocation2 [shape = 'u8[4096]{0}', space=vmem, size = 0x1000, scoped, tag = 'input window, operand 0, single buffered']
    #allocation3 [shape = 's32[1]{0}', space=sflag, size = 0x4, scoped, tag = 'scoped memory for tpu_custom_call.1']
    #allocation4 [shape = 's32[1]{0}', space=sflag, size = 0x4, scoped, tag = 'scoped memory for tpu_custom_call.1']
    #allocation5 [shape = 'u8[2048]{0}', space=vmem, size = 0x800, scoped, tag = 'output window, operand 0, single buffered']
    %6 = vsyncpa [#allocation3], 0
    %7 = vsyncpa [#allocation4], 0
    // Predicated region
    $region2: #{tpu_custom_call.1} parent=1 // pred_check
      _
    $region3: #{tpu_custom_call.1} parent=1 // pred_check_branch
      %9 = sbr.rel (0) target = $region5
    $region4: #{tpu_custom_call.1} parent=1 // pred_region
      %s11 = ssub.s32 128, 128
      %12 = vsyncadd [#allocation3], %s11
      %s14 = sshll.u32 [#allocation2], 4
      %s15 = int_to_ptr.vmem [resolvable:$true] %s14
      %17 = dma.hbm_to_vmem [thread:$0]  %s0, 128, %s15, [#allocation3]
    $region5: #{tpu_custom_call.1} parent=1 // pred_fallthru
      _
    // Predicated region
    $region6: #{tpu_custom_call.1} parent=1 // pred_check
      _
    $region7: #{tpu_custom_call.1} parent=1 // pred_check_branch
      %19 = sbr.rel (0) target = $region9
    $region8: #{tpu_custom_call.1} parent=1 // pred_region
      %20 = dma.done [#allocation3], 128
    $region9: #{tpu_custom_call.1} parent=1 // pred_fallthru
      _
    %v21 = vld [vmem:[#allocation2] sm:$0xff]
    %v22 = vmul.f32 %v21, %v21
    %vm23 = vcmask 261120
    %v24 = vsel %vm23, %v22, 0.0
    %25 = vadd.xlane.f32.xlu0 %v24
    %v26 = vpop.xlane.xlu0 %25
    %v27 = vmax.f32 %v26, 1e-24
    %v28 = vrsqrt.pop %v27
    %v29 = vmul.f32 %v21, %v28
    %v30 = vpack.c.bf16 %v29, %v29
    %vm31 = vcmask 257024
    %32 = vst.msk [vmem:[#allocation5] sm:$0xf] %vm31, %v30
    // Predicated region
    $region10: #{tpu_custom_call.1} parent=1 // pred_check
      _
    $region11: #{tpu_custom_call.1} parent=1 // pred_check_branch
      %34 = sbr.rel (0) target = $region13
    $region12: #{tpu_custom_call.1} parent=1 // pred_region
      %s36 = ssub.s32 64, 64
      %37 = vsyncadd [#allocation4], %s36
      %s39 = sshll.u32 [#allocation5], 4
      %s40 = int_to_ptr.vmem [resolvable:$true] %s39
      %42 = dma.vmem_to_hbm [thread:$0]  %s40, 64, %s1, [#allocation4]
    $region13: #{tpu_custom_call.1} parent=1 // pred_fallthru
      _
    // Predicated region
    $region14: #{tpu_custom_call.1} parent=1 // pred_check
      _
    $region15: #{tpu_custom_call.1} parent=1 // pred_check_branch
      %44 = sbr.rel (0) target = $region17
    $region16: #{tpu_custom_call.1} parent=1 // pred_region
      %45 = dma.done [#allocation4], 64
    $region17: #{tpu_custom_call.1} parent=1 // pred_fallthru
      _
    %46 = vsyncpa [#allocation3], 1
    %47 = vsyncpa [#allocation4], 1

</llo_original>
